<compile_context>
chip_gen: v6e
topology: v6e:2x2x1
jax: 0.10.0
libtpu: 0.0.40
codegen_flags: <defaults>
</compile_context>

<pallas_src>
import functools
import math

import jax
import jax.numpy as jnp
from jax import lax
from jax.experimental import pallas as pl
from jax.experimental.pallas import tpu as pltpu


_MAX_TILE_ROWS = 32768          # sanity cap only; budget normally binds first
_MAX_SUPERBLOCK_LANES = 1024    # cap on G = lcm(C, 128) for the grouped path


def _round_up(a, b):
    return (a + b - 1) // b * b


@functools.lru_cache(maxsize=None)
def _budgets():
    """(hbm_block_bytes, vmem_limit_bytes) chosen per TPU generation."""
    cap = 64 * 1024 * 1024          # conservative default (v7x per-TC VMEM)
    try:
        info = pltpu.get_tpu_info()
        cap = int(getattr(info, "vmem_capacity_bytes", cap))
    except Exception:
        pass
    if cap >= 100 * 1024 * 1024:
        # v5e / v6e: 128 MiB physical VMEM -> 8 MiB HBM-side blocks.
        return 8 * 1024 * 1024, 96 * 1024 * 1024
    # v7x: 64 MiB per TensorCore -> hold the line at 4 MiB blocks.
    return 4 * 1024 * 1024, 44 * 1024 * 1024


def _compiler_params(dims, vmem_limit):
    return pltpu.CompilerParams(
        dimension_semantics=dims,
        vmem_limit_bytes=vmem_limit,
    )


def _pick_tile_rows(n_rows, row_vmem_bytes, itemsize, block_bytes):
    """Largest row tile (dtype-native sublane multiple) within the budget.

    Also guarantees the 1-D parallel grid gets >= 2 steps whenever legally
    possible so both v7x TensorCores receive work (harmless on v5e/v6e).
    """
    sub = 32 // itemsize                       # f32: 8, bf16: 16, int8/fp8: 32
    tm = block_bytes // max(int(row_vmem_bytes), 1)
    tm = max(sub, min(_MAX_TILE_ROWS, (tm // sub) * sub))
    if n_rows <= tm:
        tm = int(n_rows)                       # full extent -> legal block
        if n_rows >= 2 * sub:                  # split so grid has >= 2 steps
            tm = _round_up((n_rows + 1) // 2, sub)
    return int(tm)


# --------------------------------------------------------------------------
# Kernels
# --------------------------------------------------------------------------
def _ln_rows_kernel(x_ref, w_ref, b_ref, o_ref, *, eps):
    """LayerNorm over the last (lane) axis of a (TM, C) block."""
    x = x_ref[...].astype(jnp.float32)                 # (TM, C)
    mean = jnp.mean(x, axis=-1, keepdims=True)         # (TM, 1)
    xc = x - mean
    var = jnp.mean(xc * xc, axis=-1, keepdims=True)    # biased variance
    inv = lax.rsqrt(var + eps)
    w = w_ref[...].astype(jnp.float32)                 # (1, C)
    b = b_ref[...].astype(jnp.float32)                 # (1, C)
    o_ref[...] = (xc * inv * w + b).astype(o_ref.dtype)


def _ln_rows_grouped_kernel(x_ref, w_ref, b_ref, seg_ref, segt_ref, o_ref,
                            *, eps, inv_c):
    """g = G // C independent LayerNorm rows packed per G-lane superblock.

    Segment reductions / broadcast-back use 0/1 matrices on the MXU so the
    HBM-facing blocks stay fully lane-dense.  precision=HIGHEST keeps the
    f32 accuracy of the reference implementation (do NOT relax the two
    reduction matmuls).
    """
    hi = lax.Precision.HIGHEST
    x = x_ref[...].astype(jnp.float32)                 # (TM, G)
    seg = seg_ref[...]                                 # (G, g)  0/1
    segt = segt_ref[...]                               # (g, G)  0/1
    mean_g = jnp.dot(x, seg, precision=hi,
                     preferred_element_type=jnp.float32) * inv_c       # (TM, g)
    xc = x - jnp.dot(mean_g, segt, precision=hi,
                     preferred_element_type=jnp.float32)               # (TM, G)
    var_g = jnp.dot(xc * xc, seg, precision=hi,
                    preferred_element_type=jnp.float32) * inv_c        # (TM, g)
    inv_g = lax.rsqrt(var_g + eps)                                     # (TM, g)
    inv = jnp.dot(inv_g, segt, precision=hi,
                  preferred_element_type=jnp.float32)                  # (TM, G)
    w = w_ref[...].astype(jnp.float32)                                 # (1, G)
    b = b_ref[...].astype(jnp.float32)                                 # (1, G)
    o_ref[...] = (xc * inv * w + b).astype(o_ref.dtype)


def _ln_nchw_kernel(x_ref, w_ref, b_ref, o_ref, *, eps):
    """LayerNorm over the C axis of a (TB, C, TH, W) block (original layout)."""
    x = x_ref[...].astype(jnp.float32)                 # (TB, C, TH, W)
    mean = jnp.mean(x, axis=1, keepdims=True)          # (TB, 1, TH, W)
    xc = x - mean
    var = jnp.mean(xc * xc, axis=1, keepdims=True)     # biased variance
    inv = lax.rsqrt(var + eps)
    w = w_ref[...].astype(jnp.float32)                 # (1, C, 1, 1)
    b = b_ref[...].astype(jnp.float32)                 # (1, C, 1, 1)
    o_ref[...] = (xc * inv * w + b).astype(o_ref.dtype)


# --------------------------------------------------------------------------
# Wrappers
# --------------------------------------------------------------------------
def _ln_channels_last(x, weight, bias, eps):
    orig_shape = x.shape
    c = int(orig_shape[-1])
    n = int(x.size // c)
    itemsize = jnp.dtype(x.dtype).itemsize
    block_bytes, vmem_limit = _budgets()

    # ---- lane-dense grouped path (C not a multiple of 128) -------------------
    g = 0
    if c % 128 != 0:
        G0 = c * 128 // math.gcd(c, 128)               # lcm(c, 128)
        if G0 <= _MAX_SUPERBLOCK_LANES:
            g = G0 // c
    if g > 1:
        G = g * c
        pad_rows = (-n) % g
        # Collapsing the leading dims of a contiguous channels_last tensor
        # keeps the minor dim / tiling, so this reshape is a bitcast view.
        x2d = x.reshape(n, c)
        if pad_rows:
            # One small pad/slice pass; still far cheaper than streaming the
            # whole tensor through lane-sparse (c/128-lane) masked stores.
            x2d = jnp.pad(x2d, ((0, pad_rows), (0, 0)))
        n_pad = n + pad_rows
        nr = n_pad // g
        x2d = x2d.reshape(nr, G)
        tm = _pick_tile_rows(nr, G * itemsize, itemsize, block_bytes)

        lane = jnp.arange(G, dtype=jnp.int32)
        seg = (lane[:, None] // c
               == jnp.arange(g, dtype=jnp.int32)[None, :]).astype(jnp.float32)
        w2d = jnp.tile(weight.reshape(1, c), (1, g))
        b2d = jnp.tile(bias.reshape(1, c), (1, g))

        cost = pl.CostEstimate(
            flops=int(14 * n_pad * c),
            transcendentals=int(n_pad),
            bytes_accessed=int(2 * n_pad * c * itemsize),
        )
        out = pl.pallas_call(
            functools.partial(_ln_rows_grouped_kernel, eps=eps, inv_c=1.0 / c),
            out_shape=jax.ShapeDtypeStruct((nr, G), x.dtype),
            grid_spec=pltpu.PrefetchScalarGridSpec(
                num_scalar_prefetch=0,
                grid=(pl.cdiv(nr, tm),),
                in_specs=[
                    pl.BlockSpec((tm, G), lambda i: (i, 0)),
                    pl.BlockSpec((1, G), lambda i: (0, 0)),
                    pl.BlockSpec((1, G), lambda i: (0, 0)),
                    pl.BlockSpec((G, g), lambda i: (0, 0)),
                    pl.BlockSpec((g, G), lambda i: (0, 0)),
                ],
                out_specs=pl.BlockSpec((tm, G), lambda i: (i, 0)),
            ),
            compiler_params=_compiler_params(("parallel",), vmem_limit),
            cost_estimate=cost,
        )(x2d, w2d, b2d, seg, seg.T)
        out = out.reshape(n_pad, c)
        if pad_rows:
            out = out[:n]
        return out.reshape(orig_shape)

    # ---- general row path (C a multiple of 128, or awkward lcm) --------------
    x2d = x.reshape(n, c)
    row_vmem_bytes = _round_up(c, 128) * itemsize
    tm = _pick_tile_rows(n, row_vmem_bytes, itemsize, block_bytes)
    cost = pl.CostEstimate(
        flops=int(8 * n * c),
        transcendentals=int(n),
        bytes_accessed=int(2 * n * c * itemsize),
    )
    out = pl.pallas_call(
        functools.partial(_ln_rows_kernel, eps=eps),
        out_shape=jax.ShapeDtypeStruct((n, c), x.dtype),
        grid_spec=pltpu.PrefetchScalarGridSpec(
            num_scalar_prefetch=0,
            grid=(pl.cdiv(n, tm),),
            in_specs=[
                pl.BlockSpec((tm, c), lambda i: (i, 0)),
                pl.BlockSpec((1, c), lambda i: (0, 0)),
                pl.BlockSpec((1, c), lambda i: (0, 0)),
            ],
            out_specs=pl.BlockSpec((tm, c), lambda i: (i, 0)),
        ),
        compiler_params=_compiler_params(("parallel",), vmem_limit),
        cost_estimate=cost,
    )(x2d, weight.reshape(1, c), bias.reshape(1, c))
    return out.reshape(orig_shape)


def _ln_channels_first(x, weight, bias, eps):
    bsz, c, h, w = (int(d) for d in x.shape)
    itemsize = jnp.dtype(x.dtype).itemsize
    block_bytes, vmem_limit = _budgets()

    # VMEM footprint accounting uses the (8, 128)-padded minor dims; the C axis
    # is a leading dim so C < 8 costs no sublane padding here.
    w_pad = _round_up(w, 128)
    slab_bytes = c * _round_up(h, 8) * w_pad * itemsize    # one (1,C,H,W) block
    if slab_bytes <= block_bytes:
        th = h
        tb = max(1, min(bsz, block_bytes // max(slab_bytes, 1)))
    else:
        tb = 1
        th = max(8, (block_bytes // max(c * w_pad * itemsize, 1)) // 8 * 8)
        if th >= h:
            th = h

    # Keep >= 2 grid steps so both v7x TensorCores get work (harmless on
    # single-TC v5e/v6e).
    if pl.cdiv(bsz, tb) * pl.cdiv(h, th) < 2:
        if bsz >= 2:
            tb = (bsz + 1) // 2
        elif h > 8:
            th = _round_up((h + 1) // 2, 8)

    grid = (pl.cdiv(bsz, tb), pl.cdiv(h, th))
    cost = pl.CostEstimate(
        flops=int(8 * x.size),
        transcendentals=int(bsz * h * w),
        bytes_accessed=int(2 * x.size * itemsize),
    )
    out = pl.pallas_call(
        functools.partial(_ln_nchw_kernel, eps=eps),
        out_shape=jax.ShapeDtypeStruct((bsz, c, h, w), x.dtype),
        grid_spec=pltpu.PrefetchScalarGridSpec(
            num_scalar_prefetch=0,
            grid=grid,
            in_specs=[
                pl.BlockSpec((tb, c, th, w), lambda i, j: (i, 0, j, 0)),
                pl.BlockSpec((1, c, 1, 1), lambda i, j: (0, 0, 0, 0)),
                pl.BlockSpec((1, c, 1, 1), lambda i, j: (0, 0, 0, 0)),
            ],
            out_specs=pl.BlockSpec((tb, c, th, w), lambda i, j: (i, 0, j, 0)),
        ),
        compiler_params=_compiler_params(("parallel", "parallel"), vmem_limit),
        cost_estimate=cost,
    )(x, weight.reshape(1, c, 1, 1), bias.reshape(1, c, 1, 1))
    return out


def layer_norm(x, weight, bias, eps=1e-6, data_format="channels_last"):
    if data_format not in ("channels_last", "channels_first"):
        raise NotImplementedError
    if data_format == "channels_last":
        return _ln_channels_last(x, weight, bias, eps)
    return _ln_channels_first(x, weight, bias, eps)


# --------------------------------------------------------------------------
# Reference (pure JAX, mirrors the PyTorch module)
# --------------------------------------------------------------------------
def _ref_layer_norm(x, weight, bias, eps, data_format):
    if data_format == "channels_last":
        mean = jnp.mean(x, axis=-1, keepdims=True)
        var = jnp.mean((x - mean) ** 2, axis=-1, keepdims=True)
        return (x - mean) / jnp.sqrt(var + eps) * weight + bias
    mean = jnp.mean(x, axis=1, keepdims=True)
    var = jnp.mean((x - mean) ** 2, axis=1, keepdims=True)
    xn = (x - mean) / jnp.sqrt(var + eps)
    return weight[None, :, None, None] * xn + bias[None, :, None, None]


if __name__ == "__main__":
    key = jax.random.PRNGKey(0)
    k1, k2, k3, k4, k5, k6, k7 = jax.random.split(key, 7)

    # channels_first: NCHW, normalized_shape = C = 4 (4-D NCHW-native kernel).
    x_cf = jax.random.normal(k1, (2, 4, 16, 16), dtype=jnp.float32)
    w_cf = jnp.ones((4,), jnp.float32)      # module init: torch.ones
    b_cf = jnp.zeros((4,), jnp.float32)     # module init: torch.zeros
    y_cf = layer_norm(x_cf, w_cf, b_cf, eps=1e-6, data_format="channels_first")
    y_cf = jax.block_until_ready(y_cf)
    ref_cf = _ref_layer_norm(x_cf, w_cf, b_cf, 1e-6, "channels_first")
    assert y_cf.shape == x_cf.shape
    assert jnp.allclose(y_cf, ref_cf, atol=1e-5, rtol=1e-5)

    # channels_last: NHWC, C = 32 (lane-dense grouped kernel, g = 4).
    x_cl = jax.random.normal(k2, (2, 16, 16, 32), dtype=jnp.float32)
    w_cl = jnp.ones((32,), jnp.float32)
    b_cl = jnp.zeros((32,), jnp.float32)
    y_cl = layer_norm(x_cl, w_cl, b_cl, eps=1e-6, data_format="channels_last")
    y_cl = jax.block_until_ready(y_cl)
    ref_cl = _ref_layer_norm(x_cl, w_cl, b_cl, 1e-6, "channels_last")
    assert y_cl.shape == x_cl.shape
    assert jnp.allclose(y_cl, ref_cl, atol=1e-5, rtol=1e-5)

    # channels_last, C = 96 (lcm superblock path: G = 384, g = 4).
    x_96 = jax.random.normal(k3, (2, 8, 8, 96), dtype=jnp.float32)
    w_96 = 1.0 + 0.1 * jax.random.normal(k4, (96,), dtype=jnp.float32)
    b_96 = 0.1 * jax.random.normal(k5, (96,), dtype=jnp.float32)
    y_96 = layer_norm(x_96, w_96, b_96, eps=1e-6, data_format="channels_last")
    y_96 = jax.block_until_ready(y_96)
    ref_96 = _ref_layer_norm(x_96, w_96, b_96, 1e-6, "channels_last")
    assert jnp.allclose(y_96, ref_96, atol=1e-5, rtol=1e-5)

    # channels_last, C = 32 with ragged row count (exercises pad fallback).
    x_rg = jax.random.normal(k6, (3, 5, 5, 32), dtype=jnp.float32)
    y_rg = layer_norm(x_rg, w_cl, b_cl, eps=1e-6, data_format="channels_last")
    y_rg = jax.block_until_ready(y_rg)
    ref_rg = _ref_layer_norm(x_rg, w_cl, b_cl, 1e-6, "channels_last")
    assert y_rg.shape == x_rg.shape
    assert jnp.allclose(y_rg, ref_rg, atol=1e-5, rtol=1e-5)

    # channels_last, C = 256 (general lane-dense row kernel), non-trivial affine.
    x_big = jax.random.normal(k3, (2, 8, 8, 256), dtype=jnp.float32)
    w_big = 1.0 + 0.1 * jax.random.normal(k4, (256,), dtype=jnp.float32)
    b_big = 0.1 * jax.random.normal(k5, (256,), dtype=jnp.float32)
    y_big = layer_norm(x_big, w_big, b_big, eps=1e-6, data_format="channels_last")
    y_big = jax.block_until_ready(y_big)
    ref_big = _ref_layer_norm(x_big, w_big, b_big, 1e-6, "channels_last")
    assert jnp.allclose(y_big, ref_big, atol=1e-5, rtol=1e-5)

    # bf16 input (exercises dtype-aware row budgeting; f32 math inside kernel).
    x_bf = jax.random.normal(k7, (2, 8, 8, 256), dtype=jnp.bfloat16)
    y_bf = layer_norm(x_bf, w_big, b_big, eps=1e-6, data_format="channels_last")
    y_bf = jax.block_until_ready(y_bf)
    ref_bf = _ref_layer_norm(x_bf.astype(jnp.float32), w_big, b_big,
                             1e-6, "channels_last")
    assert jnp.allclose(y_bf.astype(jnp.float32), ref_bf, atol=5e-2, rtol=5e-2)

    print("KERNEL_OK")
</pallas_src>

<mosaic_0001>
module attributes {stable_mosaic.version = 11 : i64} {
  func.func @_ln_nchw_kernel(%arg0: i32, %arg1: i32, %arg2: memref<1x4x16x16xf32, #tpu.memory_space<vmem>>, %arg3: memref<1x4x1x1xf32, #tpu.memory_space<vmem>>, %arg4: memref<1x4x1x1xf32, #tpu.memory_space<vmem>>, %arg5: memref<1x4x16x16xf32, #tpu.memory_space<vmem>>) attributes {dimension_semantics = [#tpu.dimension_semantics<parallel>, #tpu.dimension_semantics<parallel>], iteration_bounds = array<i64: 2, 1>, scalar_prefetch = 0 : i64, scratch_operands = 0 : i64, tpu.core_type = #tpu.core_type<tc>, window_params = [{transform_indices = @transform_0, window_bounds = array<i64: 1, 4, 16, 16>}, {pipeline_mode = #tpu.pipeline_mode<synchronous>, transform_indices = @transform_1, window_bounds = array<i64: 1, 4, 1, 1>}, {pipeline_mode = #tpu.pipeline_mode<synchronous>, transform_indices = @transform_2, window_bounds = array<i64: 1, 4, 1, 1>}, {transform_indices = @transform_3, window_bounds = array<i64: 1, 4, 16, 16>}]} {
    %c0 = arith.constant 0 : index
    %c0_0 = arith.constant 0 : index
    %c0_1 = arith.constant 0 : index
    %c0_2 = arith.constant 0 : index
    %0 = vector.load %arg2[%c0, %c0_0, %c0_1, %c0_2] : memref<1x4x16x16xf32, #tpu.memory_space<vmem>>, vector<1x4x16x16xf32>
    %cst = arith.constant dense<0.000000e+00> : vector<1x16x16xf32>
    %1 = vector.multi_reduction <add>, %0, %cst [1] : vector<1x4x16x16xf32> to vector<1x16x16xf32>
    %2 = vector.shape_cast %1 : vector<1x16x16xf32> to vector<1x1x16x16xf32>
    %cst_3 = arith.constant 4.000000e+00 : f32
    %3 = vector.broadcast %cst_3 : f32 to vector<1x1x16x16xf32>
    %4 = arith.divf %2, %3 : vector<1x1x16x16xf32>
    %5 = vector.broadcast %4 : vector<1x1x16x16xf32> to vector<1x4x16x16xf32>
    %6 = arith.subf %0, %5 : vector<1x4x16x16xf32>
    %7 = arith.mulf %6, %6 : vector<1x4x16x16xf32>
    %cst_4 = arith.constant dense<0.000000e+00> : vector<1x16x16xf32>
    %8 = vector.multi_reduction <add>, %7, %cst_4 [1] : vector<1x4x16x16xf32> to vector<1x16x16xf32>
    %9 = vector.shape_cast %8 : vector<1x16x16xf32> to vector<1x1x16x16xf32>
    %cst_5 = arith.constant 4.000000e+00 : f32
    %10 = vector.broadcast %cst_5 : f32 to vector<1x1x16x16xf32>
    %11 = arith.divf %9, %10 : vector<1x1x16x16xf32>
    %cst_6 = arith.constant 9.99999997E-7 : f32
    %12 = vector.broadcast %cst_6 : f32 to vector<1x1x16x16xf32>
    %13 = arith.addf %11, %12 : vector<1x1x16x16xf32>
    %14 = math.rsqrt %13 : vector<1x1x16x16xf32>
    %c0_7 = arith.constant 0 : index
    %c0_8 = arith.constant 0 : index
    %c0_9 = arith.constant 0 : index
    %c0_10 = arith.constant 0 : index
    %15 = vector.load %arg3[%c0_7, %c0_8, %c0_9, %c0_10] : memref<1x4x1x1xf32, #tpu.memory_space<vmem>>, vector<1x4x1x1xf32>
    %c0_11 = arith.constant 0 : index
    %c0_12 = arith.constant 0 : index
    %c0_13 = arith.constant 0 : index
    %c0_14 = arith.constant 0 : index
    %16 = vector.load %arg4[%c0_11, %c0_12, %c0_13, %c0_14] : memref<1x4x1x1xf32, #tpu.memory_space<vmem>>, vector<1x4x1x1xf32>
    %17 = vector.broadcast %14 : vector<1x1x16x16xf32> to vector<1x4x16x16xf32>
    %18 = arith.mulf %6, %17 : vector<1x4x16x16xf32>
    %19 = vector.broadcast %15 : vector<1x4x1x1xf32> to vector<1x4x16x16xf32>
    %20 = arith.mulf %18, %19 : vector<1x4x16x16xf32>
    %21 = vector.broadcast %16 : vector<1x4x1x1xf32> to vector<1x4x16x16xf32>
    %22 = arith.addf %20, %21 : vector<1x4x16x16xf32>
    %c0_15 = arith.constant 0 : index
    %c0_16 = arith.constant 0 : index
    %c0_17 = arith.constant 0 : index
    %c0_18 = arith.constant 0 : index
    %23 = vector.load %arg5[%c0_15, %c0_16, %c0_17, %c0_18] : memref<1x4x16x16xf32, #tpu.memory_space<vmem>>, vector<1x4x16x16xf32>
    tpu.vector_store %arg5[%c0_15, %c0_16, %c0_17, %c0_18], %22 {strides = array<i32>} : memref<1x4x16x16xf32, #tpu.memory_space<vmem>>, vector<1x4x16x16xf32>,
    return
  }
  func.func @transform_0(%arg0: i32, %arg1: i32) -> (i32, i32, i32, i32) {
    %c0_i32 = arith.constant 0 : i32
    %c0_i32_0 = arith.constant 0 : i32
    %c0_i32_1 = arith.constant 0 : i32
    return %arg0, %c0_i32, %arg1, %c0_i32_0 : i32, i32, i32, i32
  }
  func.func @transform_1(%arg0: i32, %arg1: i32) -> (i32, i32, i32, i32) {
    %c0_i32 = arith.constant 0 : i32
    %c0_i32_0 = arith.constant 0 : i32
    %c0_i32_1 = arith.constant 0 : i32
    %c0_i32_2 = arith.constant 0 : i32
    %c0_i32_3 = arith.constant 0 : i32
    return %c0_i32, %c0_i32_0, %c0_i32_1, %c0_i32_2 : i32, i32, i32, i32
  }
  func.func @transform_2(%arg0: i32, %arg1: i32) -> (i32, i32, i32, i32) {
    %c0_i32 = arith.constant 0 : i32
    %c0_i32_0 = arith.constant 0 : i32
    %c0_i32_1 = arith.constant 0 : i32
    %c0_i32_2 = arith.constant 0 : i32
    %c0_i32_3 = arith.constant 0 : i32
    return %c0_i32, %c0_i32_0, %c0_i32_1, %c0_i32_2 : i32, i32, i32, i32
  }
  func.func @transform_3(%arg0: i32, %arg1: i32) -> (i32, i32, i32, i32) {
    %c0_i32 = arith.constant 0 : i32
    %c0_i32_0 = arith.constant 0 : i32
    %c0_i32_1 = arith.constant 0 : i32
    return %arg0, %c0_i32, %arg1, %c0_i32_0 : i32, i32, i32, i32
  }
}

</mosaic_0001>

<llo_original>
// kernel: tpu_custom_call.1
$region0: #{tpu_custom_call.1}
  #allocation0 [shape = 'u32[]', space=smem, size = 0x4, offset = 0x4, fixed_abs, tag = 'smem constant byte address 0x4 - core index']
  #allocation1 [shape = 'u32[144,128]{1,0:T(1,128)}', space=vmem, size = 0x12000, scoped, tag = 'internal scratch']
  %s0 = inlined_call_operand.hbm [shape: f32[2,4,16,16], index: 0, kind: input, shape index: {}]
  %s1 = inlined_call_operand.vmem [shape: f32[1,4,1,1], index: 1, kind: input, shape index: {}]
  %s2 = inlined_call_operand.vmem [shape: f32[1,4,1,1], index: 2, kind: input, shape index: {}]
  %s3 = inlined_call_operand.hbm [shape: f32[2,4,16,16], index: 3, kind: output, shape index: {}]
  %s4 = sld [smem:[#allocation0]]
  $region49: #{tpu_custom_call.1} parent=0
    _
  %s6 = ssub.s32 1, %s4
  %s7 = scalar_select 0, %s6, %s4
  $region1: #{tpu_custom_call.1} parent=0
    #allocation2 [shape = 'u8[65536]{0}', space=vmem, size = 0x10000, scoped, tag = 'input window, operand 0']
    #allocation3 [shape = 's32[2]{0}', space=sflag, size = 0x8, scoped, tag = 'scoped memory for tpu_custom_call.1']
    #allocation4 [shape = 's32[2]{0}', space=sflag, size = 0x8, scoped, tag = 'scoped memory for tpu_custom_call.1']
    #allocation5 [shape = 'u8[65536]{0}', space=vmem, size = 0x10000, scoped, tag = 'output window, operand 0']
    %8 = vsyncpa [#allocation3], 0
    %s9 = scalar_lea.sflag [#allocation3], 1
    %10 = vsyncpa %s9, 0
    %11 = vsyncpa [#allocation4], 0
    %s12 = scalar_lea.sflag [#allocation4], 1
    %13 = vsyncpa %s12, 0
    loop: start=0, step=1, limit=4
    $region2: #{tpu_custom_call.1} parent=1 // loop_pre_header
      _
    $region3: #{tpu_custom_call.1} parent=1 // loop_header
      %s15 = sphi 0, %s19
      %p16 = scmp.ge.s32.totalorder %s15, 4
      %s22 = sphi 0, %s34
      %s23 = sphi 0, %s30
      %s24 = sphi 0, %s22
      %s25 = sphi 0, %s23
      %s26 = sphi 0, %s24
      %s27 = sphi 0, %s25
      %s39 = sphi 0, %s41
      %s42 = sphi 0, %s39
      %s43 = sphi 0, %s42
      %s59 = sphi 0, %s43
      %s63 = sphi 0, %s63
      %s65 = sphi 0, %s63
      %s66 = sphi 0, %s65
      %s80 = sphi 0, %s66
      %s84 = sphi 0, %s84
      %s86 = sphi 0, %s84
      %s87 = sphi 0, %s86
      %s101 = sphi 0, %s87
      %s109 = sphi 0, %s111
      %s112 = sphi 0, %s109
      %s113 = sphi 0, %s112
      %s129 = sphi 0, %s113
    $region4: #{tpu_custom_call.1} parent=1 // loop_header_branch
      %18 = sbr.rel (%p16) target = $region8
    $region5: #{tpu_custom_call.1} parent=1 // loop_body
      %s20 = ssub.s32 %s15, 1
      %s21 = ssub.s32 %s15, 2
      %s28 = sadd.s32 1, %s23
      %p29 = scmp.ge.s32.totalorder %s28, 1
      %s30 = scalar_select %p29, 0, %s28
      %s31 = sadd.s32 1, %s22
      %s32 = scalar_select %p29, %s31, %s22
      %p33 = scmp.ge.s32.totalorder %s32, 2
      %s34 = scalar_select %p33, 0, %s32
      %s35 = ssub.s32 %s22, %s34
      %s36 = ssub.s32 %s23, %s30
      %s37 = sor.u32 %s35, %s36
      %p38 = scmp.eq.s32.totalorder %s37, 0
      %s40 = sadd.s32 %s39, 1
      %s41 = scalar_select %p38, %s39, %s40
      %p44 = pneg %p38
      %p45 = scmp.eq.s32.totalorder %s15, 1
      %p46 = por %p44, %p45
      %p47 = scmp.ne.s32.totalorder %s39, %s42
      %p48 = scmp.eq.s32.totalorder %s15, 0
      %p49 = por %p47, %p48
      %p50 = scmp.ne.s32.totalorder %s39, %s42
      %p51 = scmp.eq.s32.totalorder %s20, 1
      %p52 = por %p50, %p51
      %p53 = scmp.ne.s32.totalorder %s42, %s43
      %p54 = scmp.eq.s32.totalorder %s20, 0
      %p55 = por %p53, %p54
      %p56 = scmp.ne.s32.totalorder %s42, %s43
      %p57 = scmp.eq.s32.totalorder %s21, 1
      %p58 = por %p56, %p57
      %p60 = scmp.ne.s32.totalorder %s43, %s59
      %p61 = scmp.eq.s32.totalorder %s21, 0
      %p62 = por %p60, %p61
      %s64 = sadd.s32 %s63, 1
      %p67 = scmp.eq.s32.totalorder %s15, 1
      %p68 = scmp.ne.s32.totalorder %s63, %s65
      %p69 = scmp.eq.s32.totalorder %s15, 0
      %p70 = por %p68, %p69
      %p71 = scmp.ne.s32.totalorder %s63, %s65
      %p72 = scmp.eq.s32.totalorder %s20, 1
      %p73 = por %p71, %p72
      %p74 = scmp.ne.s32.totalorder %s65, %s66
      %p75 = scmp.eq.s32.totalorder %s20, 0
      %p76 = por %p74, %p75
      %p77 = scmp.ne.s32.totalorder %s65, %s66
      %p78 = scmp.eq.s32.totalorder %s21, 1
      %p79 = por %p77, %p78
      %p81 = scmp.ne.s32.totalorder %s66, %s80
      %p82 = scmp.eq.s32.totalorder %s21, 0
      %p83 = por %p81, %p82
      %s85 = sadd.s32 %s84, 1
      %p88 = scmp.eq.s32.totalorder %s15, 1
      %p89 = scmp.ne.s32.totalorder %s84, %s86
      %p90 = scmp.eq.s32.totalorder %s15, 0
      %p91 = por %p89, %p90
      %p92 = scmp.ne.s32.totalorder %s84, %s86
      %p93 = scmp.eq.s32.totalorder %s20, 1
      %p94 = por %p92, %p93
      %p95 = scmp.ne.s32.totalorder %s86, %s87
      %p96 = scmp.eq.s32.totalorder %s20, 0
      %p97 = por %p95, %p96
      %p98 = scmp.ne.s32.totalorder %s86, %s87
      %p99 = scmp.eq.s32.totalorder %s21, 1
      %p100 = por %p98, %p99
      %p102 = scmp.ne.s32.totalorder %s87, %s101
      %p103 = scmp.eq.s32.totalorder %s21, 0
      %p104 = por %p102, %p103
      %s105 = ssub.s32 %s22, %s34
      %s106 = ssub.s32 %s23, %s30
      %s107 = sor.u32 %s105, %s106
      %p108 = scmp.eq.s32.totalorder %s107, 0
      %s110 = sadd.s32 %s109, 1
      %s111 = scalar_select %p108, %s109, %s110
      %p114 = pneg %p108
      %p115 = scmp.eq.s32.totalorder %s15, 1
      %p116 = por %p114, %p115
      %p117 = scmp.ne.s32.totalorder %s109, %s112
      %p118 = scmp.eq.s32.totalorder %s15, 0
      %p119 = por %p117, %p118
      %p120 = scmp.ne.s32.totalorder %s109, %s112
      %p121 = scmp.eq.s32.totalorder %s20, 1
      %p122 = por %p120, %p121
      %p123 = scmp.ne.s32.totalorder %s112, %s113
      %p124 = scmp.eq.s32.totalorder %s20, 0
      %p125 = por %p123, %p124
      %p126 = scmp.ne.s32.totalorder %s112, %s113
      %p127 = scmp.eq.s32.totalorder %s21, 1
      %p128 = por %p126, %p127
      %p130 = scmp.ne.s32.totalorder %s113, %s129
      %p131 = scmp.eq.s32.totalorder %s21, 0
      %p132 = por %p130, %p131
      %p133 = scmp.le.s32.totalorder 1, %s15
      %p134 = scmp.lt.s32.totalorder %s15, 3
      %p135 = pnand %p133, %p134
      %p136 = pneg %p135
      // Predicated region
      $region9: #{tpu_custom_call.1} parent=5 // pred_check
        _
      $region10: #{tpu_custom_call.1} parent=5 // pred_check_branch
        %138 = sbr.rel (%p135) target = $region12
      $region11: #{tpu_custom_call.1} parent=5 // pred_region
        %s139 = ssub.s32 %s15, 1
        // Predicated region
        $region13: #{tpu_custom_call.1} parent=11 // pred_check
          %p140 = pneg %p76
        $region14: #{tpu_custom_call.1} parent=11 // pred_check_branch
          %142 = sbr.rel (%p140) target = $region16
        $region15: #{tpu_custom_call.1} parent=11 // pred_region
          _
        $region16: #{tpu_custom_call.1} parent=11 // pred_fallthru
          _
        // Predicated region
        $region17: #{tpu_custom_call.1} parent=11 // pred_check
          %p143 = pneg %p97
        $region18: #{tpu_custom_call.1} parent=11 // pred_check_branch
          %145 = sbr.rel (%p143) target = $region20
        $region19: #{tpu_custom_call.1} parent=11 // pred_region
          _
        $region20: #{tpu_custom_call.1} parent=11 // pred_fallthru
          _
      $region12: #{tpu_custom_call.1} parent=5 // pred_fallthru
        _
      %p146 = scmp.lt.s32.totalorder %s15, 2
      // Predicated region
      $region21: #{tpu_custom_call.1} parent=5 // pred_check
        %p147 = pneg %p146
      $region22: #{tpu_custom_call.1} parent=5 // pred_check_branch
        %149 = sbr.rel (%p147) target = $region24
      $region23: #{tpu_custom_call.1} parent=5 // pred_region
        // Predicated region
        $region25: #{tpu_custom_call.1} parent=23 // pred_check
          %p150 = pneg %p49
        $region26: #{tpu_custom_call.1} parent=23 // pred_check_branch
          %152 = sbr.rel (%p150) target = $region28
        $region27: #{tpu_custom_call.1} parent=23 // pred_region
          %s153 = sand.u32 %s39, 1
          %s154 = scalar_lea.sflag [#allocation3], %s153
          %s155 = sand.u32 %s39, 1
          %s156 = smul.addr %s155, 64
          %s157 = scalar_lea.vmem [#allocation2], %s156
          %s158 = smul.u32 2, %s23
          %s160 = ssub.s32 1024, 1024
          %161 = vsyncadd %s154, %s160
          %s162 = smul.addr %s22, 8
          %s163 = sadd.s32 %s158, %s162
          %s164 = smul.addr %s163, 128
          %s165 = scalar_lea.hbm %s0, %s164
          %s166 = sshll.u32 %s157, 4
          %s167 = int_to_ptr.vmem [resolvable:$true] %s166
          %172 = dma.hbm_to_vmem [thread:$0]  %s165, 1024, %s167, %s154, 128, 128, 8
        $region28: #{tpu_custom_call.1} parent=23 // pred_fallthru
          _
      $region24: #{tpu_custom_call.1} parent=5 // pred_fallthru
        _
      %p173 = scmp.le.s32.totalorder 1, %s15
      %p174 = scmp.lt.s32.totalorder %s15, 3
      %p175 = pnand %p173, %p174
      %p176 = pneg %p175
      // Predicated region
      $region29: #{tpu_custom_call.1} parent=5 // pred_check
        _
      $region30: #{tpu_custom_call.1} parent=5 // pred_check_branch
        %178 = sbr.rel (%p175) target = $region32
      $region31: #{tpu_custom_call.1} parent=5 // pred_region
        %s179 = ssub.s32 %s15, 1
        %s180 = sand.u32 %s42, 1
        %s181 = scalar_lea.sflag [#allocation3], %s180
        %s182 = sand.u32 %s42, 1
        %s183 = smul.addr %s182, 64
        %s184 = scalar_lea.vmem [#allocation2], %s183
        // Predicated region
        $region33: #{tpu_custom_call.1} parent=31 // pred_check
          %p185 = pneg %p55
        $region34: #{tpu_custom_call.1} parent=31 // pred_check_branch
          %187 = sbr.rel (%p185) target = $region36
        $region35: #{tpu_custom_call.1} parent=31 // pred_region
          %188 = dma.done %s181, 1024
        $region36: #{tpu_custom_call.1} parent=31 // pred_fallthru
          _
        %s189 = sand.u32 %s42, 1
        %s190 = scalar_lea.sflag [#allocation3], %s189
        %s191 = sand.u32 %s42, 1
        %s192 = smul.addr %s191, 64
        %s193 = scalar_lea.vmem [#allocation2], %s192
        %p194 = pneg %p55
        %p195 = pneg %p52
        %p196 = pneg %p76
        %p197 = pneg %p73
        %p198 = pneg %p97
        %p199 = pneg %p94
        %p200 = pneg %p125
        %p201 = pneg %p122
        %s202 = sand.u32 %s112, 1
        %s203 = scalar_lea.sflag [#allocation4], %s202
        %s204 = sand.u32 %s112, 1
        %s205 = smul.addr %s204, 64
        %s206 = scalar_lea.vmem [#allocation5], %s205
        %s207 = smul.u32 2, %s25
        %s208 = smul.u32 2, %s25
        %v209 = vld [vmem:[%s184] sm:$0xff]
        %v210 = vld [vmem:[%s184 + $0x8] sm:$0xff]
        %v211 = vld [vmem:[%s184 + $0x10] sm:$0xff]
        %v212 = vld [vmem:[%s184 + $0x18] sm:$0xff]
        %v213 = vld [vmem:[%s184 + $0x20] sm:$0xff]
        %v214 = vld [vmem:[%s184 + $0x28] sm:$0xff]
        %v215 = vld [vmem:[%s184 + $0x30] sm:$0xff]
        %v216 = vld [vmem:[%s184 + $0x38] sm:$0xff]
        %vm217 = vcmask 130048
        %v218 = vsel %vm217, %v209, 0.0
        %v219 = vsel %vm217, %v211, 0.0
        %v220 = vadd.f32 %v218, %v219
        %v221 = vsel %vm217, %v213, 0.0
        %v222 = vadd.f32 %v220, %v221
        %v223 = vsel %vm217, %v215, 0.0
        %v224 = vadd.f32 %v222, %v223
        %v225 = vsel %vm217, %v210, 0.0
        %v226 = vsel %vm217, %v212, 0.0
        %v227 = vadd.f32 %v225, %v226
        %v228 = vsel %vm217, %v214, 0.0
        %v229 = vadd.f32 %v227, %v228
        %v230 = vsel %vm217, %v216, 0.0
        %v231 = vadd.f32 %v229, %v230
        %v232 = vrcp.pop 4.0
        %v233 = vmul.f32 %v224, %v232
        %v234 = vmul.f32 %v231, %v232
        %v235 = vsub.f32 %v209, %v233
        %v236 = vsub.f32 %v210, %v234
        %v237 = vsub.f32 %v211, %v233
        %v238 = vsub.f32 %v212, %v234
        %v239 = vsub.f32 %v213, %v233
        %v240 = vsub.f32 %v214, %v234
        %v241 = vsub.f32 %v215, %v233
        %v242 = vsub.f32 %v216, %v234
        %v243 = vmul.f32 %v235, %v235
        %v244 = vmul.f32 %v236, %v236
        %v245 = vmul.f32 %v237, %v237
        %v246 = vmul.f32 %v238, %v238
        %v247 = vmul.f32 %v239, %v239
        %v248 = vmul.f32 %v240, %v240
        %v249 = vmul.f32 %v241, %v241
        %v250 = vmul.f32 %v242, %v242
        %v251 = vsel %vm217, %v243, 0.0
        %v252 = vsel %vm217, %v245, 0.0
        %v253 = vadd.f32 %v251, %v252
        %v254 = vsel %vm217, %v247, 0.0
        %v255 = vadd.f32 %v253, %v254
        %v256 = vsel %vm217, %v249, 0.0
        %v257 = vadd.f32 %v255, %v256
        %v258 = vsel %vm217, %v244, 0.0
        %v259 = vsel %vm217, %v246, 0.0
        %v260 = vadd.f32 %v258, %v259
        %v261 = vsel %vm217, %v248, 0.0
        %v262 = vadd.f32 %v260, %v261
        %v263 = vsel %vm217, %v250, 0.0
        %v264 = vadd.f32 %v262, %v263
        %v265 = vmul.f32 %v257, %v232
        %v266 = vmul.f32 %v264, %v232
        %v267 = vadd.f32 %v265, 1e-06
        %v268 = vadd.f32 %v266, 1e-06
        %v269 = vrsqrt.pop %v267
        %v270 = vrsqrt.pop %v268
        %v271 = vld [vmem:[%s1] sm:$0x1]
        %v272 = vld [vmem:[%s1 + $0x1] sm:$0x1]
        %v273 = vld [vmem:[%s1 + $0x2] sm:$0x1]
        %v274 = vld [vmem:[%s1 + $0x3] sm:$0x1]
        %v275 = vld [vmem:[%s2] sm:$0x1]
        %v276 = vld [vmem:[%s2 + $0x1] sm:$0x1]
        %v277 = vld [vmem:[%s2 + $0x2] sm:$0x1]
        %v278 = vld [vmem:[%s2 + $0x3] sm:$0x1]
        %v279 = vmul.f32 %v235, %v269
        %v280 = vmul.f32 %v236, %v270
        %v281 = vmul.f32 %v237, %v269
        %v282 = vmul.f32 %v238, %v270
        %v283 = vmul.f32 %v239, %v269
        %v284 = vmul.f32 %v240, %v270
        %v285 = vmul.f32 %v241, %v269
        %v286 = vmul.f32 %v242, %v270
        %v291 = vlaneseq
        %v292 = vshrl.u32 %v291, 7
        %v293 = vsub.s32 0, %v292
        %v294 = vrot.slane %v271, %v293
        %v295 = vlaneseq
        %v296 = vshrl.u32 %v295, 7
        %v297 = vsub.s32 0, %v296
        %v298 = vrot.slane %v272, %v297
        %v299 = vlaneseq
        %v300 = vshrl.u32 %v299, 7
        %v301 = vsub.s32 0, %v300
        %v302 = vrot.slane %v273, %v301
        %v303 = vlaneseq
        %v304 = vshrl.u32 %v303, 7
        %v305 = vsub.s32 0, %v304
        %v306 = vrot.slane %v274, %v305
        %307 = vset.pattern.permute.xlu0 0
        %308 = vperm.xlu0 %307, %v294
        %v309 = vpop.permute.xlu0 %308
        %311 = vset.pattern.permute.xlu0 0
        %312 = vperm.xlu0 %311, %v298
        %v313 = vpop.permute.xlu0 %312
        %315 = vset.pattern.permute.xlu0 0
        %316 = vperm.xlu0 %315, %v302
        %v317 = vpop.permute.xlu0 %316
        %319 = vset.pattern.permute.xlu0 0
        %320 = vperm.xlu0 %319, %v306
        %v321 = vpop.permute.xlu0 %320
        %v323 = vmul.f32 %v279, %v309
        %v324 = vmul.f32 %v280, %v309
        %v325 = vmul.f32 %v281, %v313
        %v326 = vmul.f32 %v282, %v313
        %v327 = vmul.f32 %v283, %v317
        %v328 = vmul.f32 %v284, %v317
        %v329 = vmul.f32 %v285, %v321
        %v330 = vmul.f32 %v286, %v321
        %v335 = vlaneseq
        %v336 = vshrl.u32 %v335, 7
        %v337 = vsub.s32 0, %v336
        %v338 = vrot.slane %v275, %v337
        %v339 = vlaneseq
        %v340 = vshrl.u32 %v339, 7
        %v341 = vsub.s32 0, %v340
        %v342 = vrot.slane %v276, %v341
        %v343 = vlaneseq
        %v344 = vshrl.u32 %v343, 7
        %v345 = vsub.s32 0, %v344
        %v346 = vrot.slane %v277, %v345
        %v347 = vlaneseq
        %v348 = vshrl.u32 %v347, 7
        %v349 = vsub.s32 0, %v348
        %v350 = vrot.slane %v278, %v349
        %351 = vset.pattern.permute.xlu0 0
        %352 = vperm.xlu0 %351, %v338
        %v353 = vpop.permute.xlu0 %352
        %355 = vset.pattern.permute.xlu0 0
        %356 = vperm.xlu0 %355, %v342
        %v357 = vpop.permute.xlu0 %356
        %359 = vset.pattern.permute.xlu0 0
        %360 = vperm.xlu0 %359, %v346
        %v361 = vpop.permute.xlu0 %360
        %363 = vset.pattern.permute.xlu0 0
        %364 = vperm.xlu0 %363, %v350
        %v365 = vpop.permute.xlu0 %364
        %v367 = vadd.f32 %v323, %v353
        %v368 = vadd.f32 %v324, %v353
        %v369 = vadd.f32 %v325, %v357
        %v370 = vadd.f32 %v326, %v357
        %v371 = vadd.f32 %v327, %v361
        %v372 = vadd.f32 %v328, %v361
        %v373 = vadd.f32 %v329, %v365
        %v374 = vadd.f32 %v330, %v365
        %375 = vst.msk [vmem:[%s206] sm:$0xff] %vm217, %v367
        %376 = vst.msk [vmem:[%s206 + $0x8] sm:$0xff] %vm217, %v368
        %377 = vst.msk [vmem:[%s206 + $0x10] sm:$0xff] %vm217, %v369
        %378 = vst.msk [vmem:[%s206 + $0x18] sm:$0xff] %vm217, %v370
        %379 = vst.msk [vmem:[%s206 + $0x20] sm:$0xff] %vm217, %v371
        %380 = vst.msk [vmem:[%s206 + $0x28] sm:$0xff] %vm217, %v372
        %381 = vst.msk [vmem:[%s206 + $0x30] sm:$0xff] %vm217, %v373
        %382 = vst.msk [vmem:[%s206 + $0x38] sm:$0xff] %vm217, %v374
        %s383 = sand.u32 %s112, 1
        %s384 = scalar_lea.sflag [#allocation4], %s383
        %s385 = sand.u32 %s112, 1
        %s386 = smul.addr %s385, 64
        %s387 = scalar_lea.vmem [#allocation5], %s386
        // Predicated region
        $region37: #{tpu_custom_call.1} parent=31 // pred_check
          %p388 = pneg %p122
        $region38: #{tpu_custom_call.1} parent=31 // pred_check_branch
          %390 = sbr.rel (%p388) target = $region40
        $region39: #{tpu_custom_call.1} parent=31 // pred_region
          %s391 = smul.u32 2, %s25
          %s393 = ssub.s32 1024, 1024
          %394 = vsyncadd %s384, %s393
          %s395 = smul.addr %s24, 8
          %s396 = sadd.s32 %s391, %s395
          %s397 = smul.addr %s396, 128
          %s398 = scalar_lea.hbm %s3, %s397
          %s399 = sshll.u32 %s387, 4
          %s400 = int_to_ptr.vmem [resolvable:$true] %s399
          %405 = dma.vmem_to_hbm [thread:$0]  %s400, 1024, %s398, %s384, 128, 128, 8
        $region40: #{tpu_custom_call.1} parent=31 // pred_fallthru
          _
      $region32: #{tpu_custom_call.1} parent=5 // pred_fallthru
        _
      %p406 = scmp.le.s32.totalorder 2, %s15
      // Predicated region
      $region41: #{tpu_custom_call.1} parent=5 // pred_check
        %p407 = pneg %p406
      $region42: #{tpu_custom_call.1} parent=5 // pred_check_branch
        %409 = sbr.rel (%p407) target = $region44
      $region43: #{tpu_custom_call.1} parent=5 // pred_region
        %s410 = ssub.s32 %s15, 2
        // Predicated region
        $region45: #{tpu_custom_call.1} parent=43 // pred_check
          %p411 = pneg %p128
        $region46: #{tpu_custom_call.1} parent=43 // pred_check_branch
          %413 = sbr.rel (%p411) target = $region48
        $region47: #{tpu_custom_call.1} parent=43 // pred_region
          %s414 = sand.u32 %s113, 1
          %s415 = scalar_lea.sflag [#allocation4], %s414
          %s416 = sand.u32 %s113, 1
          %s417 = smul.addr %s416, 64
          %s418 = scalar_lea.vmem [#allocation5], %s417
          %419 = dma.done %s415, 1024
        $region48: #{tpu_custom_call.1} parent=43 // pred_fallthru
          _
      $region44: #{tpu_custom_call.1} parent=5 // pred_fallthru
        _
    $region6: #{tpu_custom_call.1} parent=1 // loop_footer
      %s19 = sadd.s32 1, %s15
    $region7: #{tpu_custom_call.1} parent=1 // loop_footer_branch
      %14 = sbr.rel target = $region3
    $region8: #{tpu_custom_call.1} parent=1 // loop_exit
      _
    %420 = vsyncpa [#allocation3], 1
    %s421 = scalar_lea.sflag [#allocation3], 1
    %422 = vsyncpa %s421, 1
    %423 = vsyncpa [#allocation4], 1
    %s424 = scalar_lea.sflag [#allocation4], 1
    %425 = vsyncpa %s424, 1

</llo_original>
